<compile_context>
chip_gen: v7x
topology: tpu7x:2x2x1
jax: 0.10.0
libtpu: 0.0.40
codegen_flags: <defaults>
</compile_context>

<pallas_src>
import functools

import jax
import jax.numpy as jnp
from jax import lax
from jax.experimental import pallas as pl
from jax.experimental.pallas import tpu as pltpu


# ----------------------------- helpers ----------------------------------------

def _cdiv(a, b):
    return -(-a // b)


def _round_up(x, m):
    return _cdiv(x, m) * m


def _vmem_capacity_bytes():
    try:
        info = pltpu.get_tpu_info()
        cap = getattr(info, "vmem_capacity_bytes", None)
        if cap:
            return int(cap)
    except Exception:
        pass
    return 64 * 1024 * 1024  # conservative default (v7x per-core VMEM)


def _pick_tiles(B, N, D, seq_dtype, msk_dtype, vmem_cap):
    """Choose (tb, tn) so double-buffered blocks + scratch fit comfortably in VMEM."""
    tb = 8 if B % 8 == 0 else B            # out-block sublane dim stays legal (8 or full B)
    d_pad = _round_up(D, 128)              # lanes always pad to 128
    s_it = jnp.dtype(seq_dtype).itemsize
    m_it = jnp.dtype(msk_dtype).itemsize if msk_dtype is not None else 0

    # Fixed VMEM: f32 accumulator (tb,1,D) + double-buffered (1,tb,1,D) f32 out blocks.
    fixed = 3 * tb * 8 * d_pad * 4
    # Bytes per unit of tn: 2 pipeline buffers for seq, plus (tb,1,tn) mask blocks
    # (the size-1 sublane dim pads to 8).
    per_n = 2 * tb * d_pad * s_it
    if msk_dtype is not None:
        per_n += 2 * tb * 8 * m_it

    budget = int(vmem_cap * 0.4)           # headroom for compiler scratch / semaphores
    tn_budget = max(1, (budget - fixed) // per_n)
    tn_cap = max(1, (8 * 1024 * 1024) // (tb * d_pad * s_it))   # <= ~8 MiB per seq block
    tn = min(N, tn_budget, tn_cap)
    if tn < N:
        # Multiple of 128: lane-legal for the mask block, sublane-legal for
        # f32(8)/bf16(16)/int8(32) packing of the seq block.
        tn = max(128, (tn // 128) * 128)
    elif N >= 256:
        # Split into >=2 lane-aligned chunks so the leading "parallel" core axis has
        # work for both v7x TensorCores and the DMA pipeline has >=2 steps to overlap.
        tn = _round_up(_cdiv(N, 2), 128)
        if tn >= N:
            tn = N
    return tb, tn


def _estimate_vmem_bytes(tb, tn, D, s_it, m_it, has_mask):
    d_pad = _round_up(D, 128)
    total = 2 * tb * _round_up(tn, 8) * d_pad * s_it            # seq blocks, 2 buffers
    if has_mask:
        total += 2 * tb * 8 * _round_up(tn, 128) * m_it          # mask blocks, 2 buffers
    total += 3 * tb * 8 * d_pad * 4                              # acc scratch + out blocks
    return total


# ----------------------------- kernel ------------------------------------------

def _readout_sum_kernel(n_rows, tn, num_k, need_tail_mask, has_mask, *refs):
    """Per-(core-slice, batch-tile) partial sums of seq (optionally mask-weighted)."""
    if has_mask:
        seq_ref, msk_ref, out_ref, acc_ref = refs
    else:
        seq_ref, out_ref, acc_ref = refs
        msk_ref = None

    c = pl.program_id(0)                   # N-range slice handled by this core
    k = pl.program_id(2)                   # reduction step within the slice

    @pl.when(k == 0)
    def _init():
        acc_ref[...] = jnp.zeros_like(acc_ref)

    cdt = jnp.bfloat16 if seq_ref.dtype == jnp.bfloat16 else jnp.float32
    seq = seq_ref[...]                     # (tb, tn, D)

    base = (c * num_k + k) * tn
    if need_tail_mask:
        # Zero rows past N (ragged last tile and/or the clamped duplicate tile a core
        # sees when the tile count is odd). Applied to both operands so unspecified
        # out-of-bounds bits (even NaN/Inf) can never reach the accumulator.
        row_seq = base + lax.broadcasted_iota(jnp.int32, (1, tn, 1), 1)
        seq = jnp.where(row_seq < n_rows, seq, 0.0)

    if has_mask:
        m = msk_ref[...]                   # (tb, 1, tn) lane-dense
        if need_tail_mask:
            row_m = base + lax.broadcasted_iota(jnp.int32, (1, 1, tn), 2)
            m = jnp.where(row_m < n_rows, m, 0.0)
        # Batched (1, tn) x (tn, D) matmul: the mask stays lane-dense, seq's N stays
        # on sublanes, and the widen + sublane reduction happens on the MXU.
        prec = lax.Precision.HIGHEST if cdt == jnp.float32 else None
        contrib = lax.dot_general(
            m.astype(cdt), seq.astype(cdt),
            dimension_numbers=(((2,), (1,)), ((0,), (0,))),
            precision=prec,
            preferred_element_type=jnp.float32)                 # (tb, 1, D)
    else:
        contrib = jnp.sum(seq.astype(jnp.float32), axis=1, keepdims=True)

    acc_ref[...] += contrib

    @pl.when(k == pl.num_programs(2) - 1)
    def _finalize():
        out_ref[0] = acc_ref[...]


# ----------------------------- wrapper ------------------------------------------

def avg_readout(seq, msk=None):
    """Pallas implementation of AvgReadout.forward(seq, msk)."""
    B, N, D = seq.shape
    has_mask = msk is not None
    vmem_cap = _vmem_capacity_bytes()
    tb, tn = _pick_tiles(B, N, D, seq.dtype, msk.dtype if has_mask else None, vmem_cap)

    total_tiles = _cdiv(N, tn)
    c_split = 2 if total_tiles >= 2 else 1        # feed both v7x TensorCores when possible
    num_k = _cdiv(total_tiles, c_split)
    # Tail masking needed whenever the covered range overshoots N.
    need_tail_mask = (c_split * num_k * tn) != N
    grid = (c_split, B // tb, num_k)

    def seq_map(c, i, k):
        g = jnp.minimum(c * num_k + k, total_tiles - 1)   # keep block index in range
        return (i, g, 0)

    in_specs = [pl.BlockSpec((tb, tn, D), seq_map)]
    operands = [seq]

    s_it = jnp.dtype(seq.dtype).itemsize
    m_it = 0
    if has_mask:
        m_it = jnp.dtype(msk.dtype).itemsize

        def msk_map(c, i, k):
            g = jnp.minimum(c * num_k + k, total_tiles - 1)
            return (i, 0, g)

        # Lane-dense (B, 1, N) layout: contiguous DMA, ~8x (not 128x) VMEM padding.
        in_specs.append(pl.BlockSpec((tb, 1, tn), msk_map))
        operands.append(msk.reshape(B, 1, N))

    est = _estimate_vmem_bytes(tb, tn, D, s_it, m_it, has_mask)
    vmem_limit = int(min(vmem_cap * 3 // 4, max(32 * 1024 * 1024, 2 * est)))

    cost = pl.CostEstimate(
        flops=2 * B * N * D,
        transcendentals=0,
        bytes_accessed=B * N * D * s_it + B * N * m_it + c_split * B * D * 4,
    )

    kernel = functools.partial(
        _readout_sum_kernel, N, tn, num_k, need_tail_mask, has_mask)

    partials = pl.pallas_call(
        kernel,
        out_shape=jax.ShapeDtypeStruct((c_split, B, 1, D), jnp.float32),
        grid_spec=pltpu.PrefetchScalarGridSpec(
            num_scalar_prefetch=0,
            grid=grid,
            in_specs=in_specs,
            out_specs=pl.BlockSpec((1, tb, 1, D), lambda c, i, k: (c, i, 0, 0)),
            scratch_shapes=[pltpu.VMEM((tb, 1, D), jnp.float32)],
        ),
        compiler_params=pltpu.CompilerParams(
            dimension_semantics=("parallel", "parallel", "arbitrary"),
            vmem_limit_bytes=vmem_limit,
        ),
        cost_estimate=cost,
    )(*operands)

    sums = jnp.sum(partials, axis=0)[:, 0, :]      # (B, D) f32 — tiny combine

    if not has_mask:
        return (sums * (1.0 / N)).astype(seq.dtype)

    # Denominator touches only B*N elements: cheaper as plain XLA than as a 1-lane
    # kernel output (saves a scratch buffer, a masked vst and an out spec).
    denom = jnp.sum(msk.astype(jnp.float32), axis=1)            # (B,)
    # PyTorch broadcast: (B, D) / (B, 1, 1) -> (B, B, D); out[i, j] = numer[j] / denom[i].
    # Done outside the kernel so the B^2*D slab never occupies kernel VMEM.
    out = sums[None, :, :] / denom[:, None, None]
    return out.astype(jnp.promote_types(seq.dtype, msk.dtype))


# ----------------------------- reference (plain JAX) -----------------------------

def avg_readout_ref(seq, msk=None):
    if msk is None:
        return jnp.mean(seq, axis=1)
    m = msk[:, :, None]
    numer = jnp.sum(seq * m, axis=1)                # (B, D)
    denom = jnp.sum(m, axis=1)[:, None, :]          # (B, 1, 1)
    return numer / denom                            # (B, B, D) via broadcasting


# ----------------------------- main ----------------------------------------------

if __name__ == "__main__":
    key = jax.random.PRNGKey(0)
    k_seq, k_msk = jax.random.split(key)

    # Small shapes consistent with the module: batch=2, nodes=8, hidden=32.
    B, N, D = 2, 8, 32
    seq = jax.random.normal(k_seq, (B, N, D), dtype=jnp.float32)
    msk = (jax.random.uniform(k_msk, (B, N), dtype=jnp.float32) > 0.3).astype(
        jnp.float32) * 0.9 + 0.1

    out_masked = jax.block_until_ready(avg_readout(seq, msk))
    ref_masked = avg_readout_ref(seq, msk)
    out_mean = jax.block_until_ready(avg_readout(seq, None))
    ref_mean = avg_readout_ref(seq, None)

    assert out_masked.shape == (B, B, D)
    assert out_mean.shape == (B, D)
    assert jnp.allclose(out_masked, ref_masked, atol=1e-5, rtol=1e-5)
    assert jnp.allclose(out_mean, ref_mean, atol=1e-5, rtol=1e-5)

    # Larger case exercising the tiled / ragged-tail / two-core-split path.
    B2, N2, D2 = 2, 300, 32
    k_seq2, k_msk2 = jax.random.split(jax.random.PRNGKey(1))
    seq2 = jax.random.normal(k_seq2, (B2, N2, D2), dtype=jnp.float32)
    msk2 = (jax.random.uniform(k_msk2, (B2, N2)) > 0.5).astype(jnp.float32)
    out2 = jax.block_until_ready(avg_readout(seq2, msk2))
    ref2 = avg_readout_ref(seq2, msk2)
    out2m = jax.block_until_ready(avg_readout(seq2, None))
    ref2m = avg_readout_ref(seq2, None)
    assert jnp.allclose(out2, ref2, atol=1e-4, rtol=1e-4)
    assert jnp.allclose(out2m, ref2m, atol=1e-4, rtol=1e-4)

    print("KERNEL_OK")
</pallas_src>

<mosaic_0001>
module attributes {stable_mosaic.version = 11 : i64} {
  func.func @_readout_sum_kernel(%arg0: i32, %arg1: i32, %arg2: i32, %arg3: memref<2x8x32xf32, #tpu.memory_space<vmem>>, %arg4: memref<2x1x8xf32, #tpu.memory_space<vmem>>, %arg5: memref<1x2x1x32xf32, #tpu.memory_space<vmem>>, %arg6: memref<2x1x32xf32, #tpu.memory_space<vmem>>) attributes {dimension_semantics = [#tpu.dimension_semantics<parallel>, #tpu.dimension_semantics<parallel>, #tpu.dimension_semantics<arbitrary>], iteration_bounds = array<i64: 1, 1, 1>, scalar_prefetch = 0 : i64, scratch_operands = 1 : i64, tpu.core_type = #tpu.core_type<tc>, window_params = [{transform_indices = @transform_0, window_bounds = array<i64: 2, 8, 32>}, {transform_indices = @transform_1, window_bounds = array<i64: 2, 1, 8>}, {transform_indices = @transform_2, window_bounds = array<i64: 1, 2, 1, 32>}]} {
    %c0_i32 = arith.constant 0 : i32
    %0 = arith.cmpi eq, %arg2, %c0_i32 : i32
    %1 = arith.extui %0 : i1 to i32
    %c0_i32_0 = arith.constant 0 : i32
    %2 = arith.cmpi ne, %1, %c0_i32_0 : i32
    scf.if %2 {
      %cst_14 = arith.constant 0.000000e+00 : f32
      %12 = vector.broadcast %cst_14 : f32 to vector<2x1x32xf32>
      %c0_15 = arith.constant 0 : index
      %c0_16 = arith.constant 0 : index
      %c0_17 = arith.constant 0 : index
      %13 = vector.load %arg6[%c0_15, %c0_16, %c0_17] : memref<2x1x32xf32, #tpu.memory_space<vmem>>, vector<2x1x32xf32>
      tpu.vector_store %arg6[%c0_15, %c0_16, %c0_17], %12 {strides = array<i32>} : memref<2x1x32xf32, #tpu.memory_space<vmem>>, vector<2x1x32xf32>,
    } else {
    }
    %c0 = arith.constant 0 : index
    %c0_1 = arith.constant 0 : index
    %c0_2 = arith.constant 0 : index
    %3 = vector.load %arg3[%c0, %c0_1, %c0_2] : memref<2x8x32xf32, #tpu.memory_space<vmem>>, vector<2x8x32xf32>
    %c0_3 = arith.constant 0 : index
    %c0_4 = arith.constant 0 : index
    %c0_5 = arith.constant 0 : index
    %4 = vector.load %arg4[%c0_3, %c0_4, %c0_5] : memref<2x1x8xf32, #tpu.memory_space<vmem>>, vector<2x1x8xf32>
    %cst = arith.constant dense<0.000000e+00> : vector<2x1x32xf32>
    %5 = tpu.matmul %4, %3, %cst {dimension_numbers = #tpu.dot_dimension_numbers<[2], [1], [1], [2], [0, 0, 0, 1, 1, 2], [0], [0]>, precision = #tpu.contract_precision<fp32>} : vector<2x1x8xf32>, vector<2x8x32xf32>, vector<2x1x32xf32> -> vector<2x1x32xf32>
    %c0_6 = arith.constant 0 : index
    %c0_7 = arith.constant 0 : index
    %c0_8 = arith.constant 0 : index
    %6 = vector.load %arg6[%c0_6, %c0_7, %c0_8] : memref<2x1x32xf32, #tpu.memory_space<vmem>>, vector<2x1x32xf32>
    %7 = arith.addf %6, %5 : vector<2x1x32xf32>
    %c0_9 = arith.constant 0 : index
    %c0_10 = arith.constant 0 : index
    %c0_11 = arith.constant 0 : index
    %8 = vector.load %arg6[%c0_9, %c0_10, %c0_11] : memref<2x1x32xf32, #tpu.memory_space<vmem>>, vector<2x1x32xf32>
    tpu.vector_store %arg6[%c0_9, %c0_10, %c0_11], %7 {strides = array<i32>} : memref<2x1x32xf32, #tpu.memory_space<vmem>>, vector<2x1x32xf32>,
    %c0_i32_12 = arith.constant 0 : i32
    %9 = arith.cmpi eq, %arg2, %c0_i32_12 : i32
    %10 = arith.extui %9 : i1 to i32
    %c0_i32_13 = arith.constant 0 : i32
    %11 = arith.cmpi ne, %10, %c0_i32_13 : i32
    scf.if %11 {
      %c0_14 = arith.constant 0 : index
      %c0_15 = arith.constant 0 : index
      %c0_16 = arith.constant 0 : index
      %12 = vector.load %arg6[%c0_14, %c0_15, %c0_16] : memref<2x1x32xf32, #tpu.memory_space<vmem>>, vector<2x1x32xf32>
      %c0_17 = arith.constant 0 : index
      %c0_18 = arith.constant 0 : index
      %c0_19 = arith.constant 0 : index
      %c0_20 = arith.constant 0 : index
      %13 = vector.load %arg5[%c0_17, %c0_18, %c0_19, %c0_20] : memref<1x2x1x32xf32, #tpu.memory_space<vmem>>, vector<1x2x1x32xf32>
      %14 = vector.shape_cast %13 : vector<1x2x1x32xf32> to vector<2x1x32xf32>
      %15 = vector.shape_cast %12 : vector<2x1x32xf32> to vector<1x2x1x32xf32>
      tpu.vector_store %arg5[%c0_17, %c0_18, %c0_19, %c0_20], %15 {strides = array<i32>} : memref<1x2x1x32xf32, #tpu.memory_space<vmem>>, vector<1x2x1x32xf32>,
    } else {
    }
    return
  }
  func.func @transform_0(%arg0: i32, %arg1: i32, %arg2: i32) -> (i32, i32, i32) {
    %c1_i32 = arith.constant 1 : i32
    %0 = arith.muli %arg0, %c1_i32 : i32
    %1 = arith.addi %0, %arg2 : i32
    %c0_i32 = arith.constant 0 : i32
    %2 = arith.minsi %1, %c0_i32 : i32
    %c0_i32_0 = arith.constant 0 : i32
    %c0_i32_1 = arith.constant 0 : i32
    return %arg1, %2, %c0_i32_0 : i32, i32, i32
  }
  func.func @transform_1(%arg0: i32, %arg1: i32, %arg2: i32) -> (i32, i32, i32) {
    %c1_i32 = arith.constant 1 : i32
    %0 = arith.muli %arg0, %c1_i32 : i32
    %1 = arith.addi %0, %arg2 : i32
    %c0_i32 = arith.constant 0 : i32
    %2 = arith.minsi %1, %c0_i32 : i32
    %c0_i32_0 = arith.constant 0 : i32
    %c0_i32_1 = arith.constant 0 : i32
    return %arg1, %c0_i32_0, %2 : i32, i32, i32
  }
  func.func @transform_2(%arg0: i32, %arg1: i32, %arg2: i32) -> (i32, i32, i32, i32) {
    %c0_i32 = arith.constant 0 : i32
    %c0_i32_0 = arith.constant 0 : i32
    %c0_i32_1 = arith.constant 0 : i32
    return %arg0, %arg1, %c0_i32, %c0_i32_0 : i32, i32, i32, i32
  }
}

</mosaic_0001>

<llo_original>
// kernel: tpu_custom_call.1
$region0: #{tpu_custom_call.1}
  #allocation0 [shape = 'u32[]', space=smem, size = 0x4, offset = 0x4, fixed_abs, tag = 'smem constant byte address 0x4 - core index']
  #allocation1 [shape = 'u32[144,128]{1,0:T(1,128)}', space=vmem, size = 0x12000, scoped, tag = 'internal scratch']
  #allocation2 [shape = 'f32[2,1,32]{2,1,0:T(1,128)}', space=vmem, size = 0x400, scoped, tag = 'scratch operand']
  %s0 = inlined_call_operand.hbm [shape: f32[2,8,32], index: 0, kind: input, shape index: {}]
  %s1 = inlined_call_operand.vmem [shape: f32[2,1,8], index: 1, kind: input, shape index: {}]
  %s2 = inlined_call_operand.hbm [shape: f32[1,2,1,32], index: 2, kind: output, shape index: {}]
  %s3 = sld [smem:[#allocation0]]
  $region30: #{tpu_custom_call.1} parent=0
    _
  %s5 = ssub.s32 1, %s3
  %s6 = scalar_select 0, %s5, %s3
  $region1: #{tpu_custom_call.1} parent=0
    #allocation3 [shape = 'u8[8192]{0}', space=vmem, size = 0x2000, scoped, tag = 'input window, operand 0, single buffered']
    #allocation4 [shape = 's32[1]{0}', space=sflag, size = 0x4, scoped, tag = 'scoped memory for tpu_custom_call.1']
    #allocation5 [shape = 's32[1]{0}', space=sflag, size = 0x4, scoped, tag = 'scoped memory for tpu_custom_call.1']
    #allocation6 [shape = 'u8[1024]{0}', space=vmem, size = 0x400, scoped, tag = 'output window, operand 0, single buffered']
    %7 = vsyncpa [#allocation4], 0
    %8 = vsyncpa [#allocation5], 0
    // Predicated region
    $region2: #{tpu_custom_call.1} parent=1 // pred_check
      _
    $region3: #{tpu_custom_call.1} parent=1 // pred_check_branch
      %10 = sbr.rel (0) target = $region5
    $region4: #{tpu_custom_call.1} parent=1 // pred_region
      %s11 = sadd.s32 0, 0
      %p12 = scmp.lt.s32.totalorder %s11, 0
      %s13 = scalar_select %p12, %s11, 0
      %s15 = ssub.s32 256, 256
      %16 = vsyncadd [#allocation4], %s15
      %s17 = smul.addr %s13, 128
      %s18 = scalar_lea.hbm %s0, %s17
      %s19 = sshll.u32 [#allocation3], 4
      %s20 = int_to_ptr.vmem [resolvable:$true] %s19
      %25 = dma.hbm_to_vmem [thread:$0]  %s18, 256, %s20, [#allocation4], 128, 128, 8
    $region5: #{tpu_custom_call.1} parent=1 // pred_fallthru
      _
    // Predicated region
    $region6: #{tpu_custom_call.1} parent=1 // pred_check
      _
    $region7: #{tpu_custom_call.1} parent=1 // pred_check_branch
      %27 = sbr.rel (0) target = $region9
    $region8: #{tpu_custom_call.1} parent=1 // pred_region
      %s28 = sadd.s32 0, 0
      %p29 = scmp.lt.s32.totalorder %s28, 0
      %s30 = scalar_select %p29, %s28, 0
      %p31 = scmp.lt.s32.totalorder %s30, 0
      %s32 = scalar_select %p31, %s30, 0
      %s33 = scalar_lea.vmem %s1, %s32
      %s34 = sadd.s32 0, 0
      %p35 = scmp.lt.s32.totalorder %s34, 0
      %s36 = scalar_select %p35, %s34, 0
    $region9: #{tpu_custom_call.1} parent=1 // pred_fallthru
      _
    // Predicated region
    $region10: #{tpu_custom_call.1} parent=1 // pred_check
      _
    $region11: #{tpu_custom_call.1} parent=1 // pred_check_branch
      %38 = sbr.rel (0) target = $region13
    $region12: #{tpu_custom_call.1} parent=1 // pred_region
      %39 = dma.done [#allocation4], 256
    $region13: #{tpu_custom_call.1} parent=1 // pred_fallthru
      _
    %s40 = sadd.s32 0, 0
    %p41 = scmp.lt.s32.totalorder %s40, 0
    %s42 = scalar_select %p41, %s40, 0
    %p43 = scmp.lt.s32.totalorder %s42, 0
    %s44 = scalar_select %p43, %s42, 0
    %s45 = scalar_lea.vmem %s1, %s44
    %s46 = sadd.s32 0, 0
    %p47 = scmp.lt.s32.totalorder %s46, 0
    %s48 = scalar_select %p47, %s46, 0
    %s49 = sadd.s32 0, 0
    %p50 = scmp.lt.s32.totalorder %s49, 0
    %s51 = scalar_select %p50, %s49, 0
    %p52 = scmp.lt.s32.totalorder %s51, 0
    %s53 = scalar_select %p52, %s51, 0
    %s54 = scalar_lea.vmem %s1, %s53
    %s55 = sadd.s32 0, 0
    %p56 = scmp.lt.s32.totalorder %s55, 0
    %s57 = scalar_select %p56, %s55, 0
    %p58 = scmp.eq.s32.totalorder 0, 0
    // Predicated region
    $region14: #{tpu_custom_call.1} parent=1 // pred_check
      %p59 = pneg %p58
    $region15: #{tpu_custom_call.1} parent=1 // pred_check_branch
      %61 = sbr.rel (%p59) target = $region17
    $region16: #{tpu_custom_call.1} parent=1 // pred_region
      %vm62 = vcmask 253952
      %63 = vst.msk [vmem:[#allocation2] sm:$0x1] %vm62, 0.0
      %64 = vst.msk [vmem:[#allocation2 + $0x1] sm:$0x1] %vm62, 0.0
    $region17: #{tpu_custom_call.1} parent=1 // pred_fallthru
      _
    %v65 = vld [vmem:[#allocation3] sm:$0xff]
    %v66 = vld [vmem:[#allocation3 + $0x8] sm:$0xff]
    %v67 = vld [vmem:[%s54] sm:$0x1]
    %v68 = vld [vmem:[%s54 + $0x1] sm:$0x1]
    %vm69 = vcmask 64512
    %v71 = vsel %vm69, %v67, 0
    %73 = vmatprep.subr.mxu0 0.0
    %v74 = vand.u32 %v65, 4294901760
    %75 = vmatpush1.msra.mxu0 %v74
    %76 = vmatprep.subr.mxu0 0.0
    %77 = vmatpush1.msra.mxu0 0.0
    %78 = vmatprep.subr.mxu0 0.0
    %79 = vmatpush1.msra.mxu0 0.0
    %80 = vmatprep.subr.mxu0 0.0
    %81 = vmatpush1.msra.mxu0 0.0
    %82 = vmatprep.subr.mxu0 0.0
    %83 = vmatpush1.msra.mxu0 0.0
    %84 = vmatprep.subr.mxu0 0.0
    %85 = vmatpush1.msra.mxu0 0.0
    %86 = vmatprep.subr.mxu0 0.0
    %87 = vmatpush1.msra.mxu0 0.0
    %88 = vmatprep.subr.mxu0 0.0
    %89 = vmatpush1.msra.mxu0 0.0
    %90 = vmatprep.subr.mxu0 0.0
    %91 = vmatpush1.msra.mxu0 0.0
    %92 = vmatprep.subr.mxu0 0.0
    %93 = vmatpush1.msra.mxu0 0.0
    %94 = vmatprep.subr.mxu0 0.0
    %95 = vmatpush1.msra.mxu0 0.0
    %96 = vmatprep.subr.mxu0 0.0
    %97 = vmatpush1.msra.mxu0 0.0
    %98 = vmatprep.subr.mxu0 0.0
    %99 = vmatpush1.msra.mxu0 0.0
    %100 = vmatprep.subr.mxu0 0.0
    %101 = vmatpush1.msra.mxu0 0.0
    %102 = vmatprep.subr.mxu0 0.0
    %103 = vmatpush1.msra.mxu0 0.0
    %104 = vmatprep.subr.mxu0 0.0
    %105 = vmatpush1.msra.mxu0 0.0
    %106 = vmatprep.subr.mxu0 0.0
    %107 = vmatpush1.msra.mxu0 0.0
    %108 = vmatprep.subr.mxu0 0.0
    %109 = vmatpush1.msra.mxu0 0.0
    %110 = vmatprep.subr.mxu0 0.0
    %111 = vmatpush1.msra.mxu0 0.0
    %112 = vmatprep.subr.mxu0 0.0
    %113 = vmatpush1.msra.mxu0 0.0
    %114 = vmatprep.subr.mxu0 0.0
    %115 = vmatpush1.msra.mxu0 0.0
    %116 = vmatprep.subr.mxu0 0.0
    %117 = vmatpush1.msra.mxu0 0.0
    %118 = vmatprep.subr.mxu0 0.0
    %119 = vmatpush1.msra.mxu0 0.0
    %120 = vmatprep.subr.mxu0 0.0
    %121 = vmatpush1.msra.mxu0 0.0
    %122 = vmatprep.subr.mxu0 0.0
    %123 = vmatpush1.msra.mxu0 0.0
    %124 = vmatprep.subr.mxu0 0.0
    %125 = vmatpush1.msra.mxu0 0.0
    %126 = vmatprep.subr.mxu0 0.0
    %127 = vmatpush1.msra.mxu0 0.0
    %128 = vmatprep.subr.mxu0 0.0
    %129 = vmatpush1.msra.mxu0 0.0
    %130 = vmatprep.subr.mxu0 0.0
    %131 = vmatpush1.msra.mxu0 0.0
    %132 = vmatprep.subr.mxu0 0.0
    %133 = vmatpush1.msra.mxu0 0.0
    %134 = vmatprep.subr.mxu0 0.0
    %135 = vmatpush1.msra.mxu0 0.0
    %136 = vmatprep.subr.mxu0 0.0
    %137 = vmatpush1.msra.mxu0 0.0
    %138 = vmatprep.mubr.f32.mxu0 0.0
    %v139 = vand.u32 %v71, 4294901760
    %v140 = vsub.f32 %v71, %v139
    %v141 = vand.u32 %v140, 4294901760
    %v142 = vsub.f32 %v140, %v141
    %v143 = vand.u32 %v142, 4294901760
    %144 = vmatmul.mubr.f32.gmra.mrb[0].mxu0 %v143
    %v145 = vpop.f32.mrb[0].mxu0
    %v146 = vadd.f32 0.0, %v145
    %v147 = vpop.f32.mrb[0].mxu0
    %148 = vdwg.mxu0
    %149 = vmatprep.subr.mxu0 0.0
    %v150 = vand.u32 %v65, 4294901760
    %v151 = vsub.f32 %v65, %v150
    %v152 = vand.u32 %v151, 4294901760
    %v153 = vsub.f32 %v151, %v152
    %v154 = vand.u32 %v153, 4294901760
    %155 = vmatpush1.msra.mxu0 %v154
    %156 = vmatprep.subr.mxu0 0.0
    %157 = vmatpush1.msra.mxu0 0.0
    %158 = vmatprep.subr.mxu0 0.0
    %159 = vmatpush1.msra.mxu0 0.0
    %160 = vmatprep.subr.mxu0 0.0
    %161 = vmatpush1.msra.mxu0 0.0
    %162 = vmatprep.subr.mxu0 0.0
    %163 = vmatpush1.msra.mxu0 0.0
    %164 = vmatprep.subr.mxu0 0.0
    %165 = vmatpush1.msra.mxu0 0.0
    %166 = vmatprep.subr.mxu0 0.0
    %167 = vmatpush1.msra.mxu0 0.0
    %168 = vmatprep.subr.mxu0 0.0
    %169 = vmatpush1.msra.mxu0 0.0
    %170 = vmatprep.subr.mxu0 0.0
    %171 = vmatpush1.msra.mxu0 0.0
    %172 = vmatprep.subr.mxu0 0.0
    %173 = vmatpush1.msra.mxu0 0.0
    %174 = vmatprep.subr.mxu0 0.0
    %175 = vmatpush1.msra.mxu0 0.0
    %176 = vmatprep.subr.mxu0 0.0
    %177 = vmatpush1.msra.mxu0 0.0
    %178 = vmatprep.subr.mxu0 0.0
    %179 = vmatpush1.msra.mxu0 0.0
    %180 = vmatprep.subr.mxu0 0.0
    %181 = vmatpush1.msra.mxu0 0.0
    %182 = vmatprep.subr.mxu0 0.0
    %183 = vmatpush1.msra.mxu0 0.0
    %184 = vmatprep.subr.mxu0 0.0
    %185 = vmatpush1.msra.mxu0 0.0
    %186 = vmatprep.subr.mxu0 0.0
    %187 = vmatpush1.msra.mxu0 0.0
    %188 = vmatprep.subr.mxu0 0.0
    %189 = vmatpush1.msra.mxu0 0.0
    %190 = vmatprep.subr.mxu0 0.0
    %191 = vmatpush1.msra.mxu0 0.0
    %192 = vmatprep.subr.mxu0 0.0
    %193 = vmatpush1.msra.mxu0 0.0
    %194 = vmatprep.subr.mxu0 0.0
    %195 = vmatpush1.msra.mxu0 0.0
    %196 = vmatprep.subr.mxu0 0.0
    %197 = vmatpush1.msra.mxu0 0.0
    %198 = vmatprep.subr.mxu0 0.0
    %199 = vmatpush1.msra.mxu0 0.0
    %200 = vmatprep.subr.mxu0 0.0
    %201 = vmatpush1.msra.mxu0 0.0
    %202 = vmatprep.subr.mxu0 0.0
    %203 = vmatpush1.msra.mxu0 0.0
    %204 = vmatprep.subr.mxu0 0.0
    %205 = vmatpush1.msra.mxu0 0.0
    %206 = vmatprep.subr.mxu0 0.0
    %207 = vmatpush1.msra.mxu0 0.0
    %208 = vmatprep.subr.mxu0 0.0
    %209 = vmatpush1.msra.mxu0 0.0
    %210 = vmatprep.subr.mxu0 0.0
    %211 = vmatpush1.msra.mxu0 0.0
    %212 = vmatprep.subr.mxu0 0.0
    %213 = vmatpush1.msra.mxu0 0.0
    %214 = vmatprep.subr.mxu0 0.0
    %215 = vmatpush1.msra.mxu0 0.0
    %216 = vmatprep.subr.mxu0 0.0
    %217 = vmatpush1.msra.mxu0 0.0
    %218 = vmatprep.mubr.f32.mxu0 0.0
    %v219 = vand.u32 %v71, 4294901760
    %220 = vmatmul.mubr.f32.gmra.mrb[0].mxu0 %v219
    %v221 = vpop.f32.mrb[0].mxu0
    %v222 = vadd.f32 %v146, %v221
    %v223 = vpop.f32.mrb[0].mxu0
    %224 = vdwg.mxu0
    %225 = vmatprep.subr.mxu0 0.0
    %v226 = vand.u32 %v65, 4294901760
    %v227 = vsub.f32 %v65, %v226
    %228 = vmatpush1.msra.mxu0 %v227
    %229 = vmatprep.subr.mxu0 0.0
    %230 = vmatpush1.msra.mxu0 0.0
    %231 = vmatprep.subr.mxu0 0.0
    %232 = vmatpush1.msra.mxu0 0.0
    %233 = vmatprep.subr.mxu0 0.0
    %234 = vmatpush1.msra.mxu0 0.0
    %235 = vmatprep.subr.mxu0 0.0
    %236 = vmatpush1.msra.mxu0 0.0
    %237 = vmatprep.subr.mxu0 0.0
    %238 = vmatpush1.msra.mxu0 0.0
    %239 = vmatprep.subr.mxu0 0.0
    %240 = vmatpush1.msra.mxu0 0.0
    %241 = vmatprep.subr.mxu0 0.0
    %242 = vmatpush1.msra.mxu0 0.0
    %243 = vmatprep.subr.mxu0 0.0
    %244 = vmatpush1.msra.mxu0 0.0
    %245 = vmatprep.subr.mxu0 0.0
    %246 = vmatpush1.msra.mxu0 0.0
    %247 = vmatprep.subr.mxu0 0.0
    %248 = vmatpush1.msra.mxu0 0.0
    %249 = vmatprep.subr.mxu0 0.0
    %250 = vmatpush1.msra.mxu0 0.0
    %251 = vmatprep.subr.mxu0 0.0
    %252 = vmatpush1.msra.mxu0 0.0
    %253 = vmatprep.subr.mxu0 0.0
    %254 = vmatpush1.msra.mxu0 0.0
    %255 = vmatprep.subr.mxu0 0.0
    %256 = vmatpush1.msra.mxu0 0.0
    %257 = vmatprep.subr.mxu0 0.0
    %258 = vmatpush1.msra.mxu0 0.0
    %259 = vmatprep.subr.mxu0 0.0
    %260 = vmatpush1.msra.mxu0 0.0
    %261 = vmatprep.subr.mxu0 0.0
    %262 = vmatpush1.msra.mxu0 0.0
    %263 = vmatprep.subr.mxu0 0.0
    %264 = vmatpush1.msra.mxu0 0.0
    %265 = vmatprep.subr.mxu0 0.0
    %266 = vmatpush1.msra.mxu0 0.0
    %267 = vmatprep.subr.mxu0 0.0
    %268 = vmatpush1.msra.mxu0 0.0
    %269 = vmatprep.subr.mxu0 0.0
    %270 = vmatpush1.msra.mxu0 0.0
    %271 = vmatprep.subr.mxu0 0.0
    %272 = vmatpush1.msra.mxu0 0.0
    %273 = vmatprep.subr.mxu0 0.0
    %274 = vmatpush1.msra.mxu0 0.0
    %275 = vmatprep.subr.mxu0 0.0
    %276 = vmatpush1.msra.mxu0 0.0
    %277 = vmatprep.subr.mxu0 0.0
    %278 = vmatpush1.msra.mxu0 0.0
    %279 = vmatprep.subr.mxu0 0.0
    %280 = vmatpush1.msra.mxu0 0.0
    %281 = vmatprep.subr.mxu0 0.0
    %282 = vmatpush1.msra.mxu0 0.0
    %283 = vmatprep.subr.mxu0 0.0
    %284 = vmatpush1.msra.mxu0 0.0
    %285 = vmatprep.subr.mxu0 0.0
    %286 = vmatpush1.msra.mxu0 0.0
    %287 = vmatprep.subr.mxu0 0.0
    %288 = vmatpush1.msra.mxu0 0.0
    %289 = vmatprep.subr.mxu0 0.0
    %290 = vmatpush1.msra.mxu0 0.0
    %291 = vmatprep.mubr.f32.mxu0 0.0
    %v292 = vand.u32 %v71, 4294901760
    %v293 = vsub.f32 %v71, %v292
    %294 = vmatmul.mubr.f32.gmra.mrb[0].mxu0 %v293
    %v295 = vpop.f32.mrb[0].mxu0
    %v296 = vadd.f32 %v222, %v295
    %v297 = vpop.f32.mrb[0].mxu0
    %298 = vdwg.mxu0
    %299 = vmatprep.subr.mxu0 0.0
    %v300 = vand.u32 %v65, 4294901760
    %301 = vmatpush1.msra.mxu0 %v300
    %302 = vmatprep.subr.mxu0 0.0
    %303 = vmatpush1.msra.mxu0 0.0
    %304 = vmatprep.subr.mxu0 0.0
    %305 = vmatpush1.msra.mxu0 0.0
    %306 = vmatprep.subr.mxu0 0.0
    %307 = vmatpush1.msra.mxu0 0.0
    %308 = vmatprep.subr.mxu0 0.0
    %309 = vmatpush1.msra.mxu0 0.0
    %310 = vmatprep.subr.mxu0 0.0
    %311 = vmatpush1.msra.mxu0 0.0
    %312 = vmatprep.subr.mxu0 0.0
    %313 = vmatpush1.msra.mxu0 0.0
    %314 = vmatprep.subr.mxu0 0.0
    %315 = vmatpush1.msra.mxu0 0.0
    %316 = vmatprep.subr.mxu0 0.0
    %317 = vmatpush1.msra.mxu0 0.0
    %318 = vmatprep.subr.mxu0 0.0
    %319 = vmatpush1.msra.mxu0 0.0
    %320 = vmatprep.subr.mxu0 0.0
    %321 = vmatpush1.msra.mxu0 0.0
    %322 = vmatprep.subr.mxu0 0.0
    %323 = vmatpush1.msra.mxu0 0.0
    %324 = vmatprep.subr.mxu0 0.0
    %325 = vmatpush1.msra.mxu0 0.0
    %326 = vmatprep.subr.mxu0 0.0
    %327 = vmatpush1.msra.mxu0 0.0
    %328 = vmatprep.subr.mxu0 0.0
    %329 = vmatpush1.msra.mxu0 0.0
    %330 = vmatprep.subr.mxu0 0.0
    %331 = vmatpush1.msra.mxu0 0.0
    %332 = vmatprep.subr.mxu0 0.0
    %333 = vmatpush1.msra.mxu0 0.0
    %334 = vmatprep.subr.mxu0 0.0
    %335 = vmatpush1.msra.mxu0 0.0
    %336 = vmatprep.subr.mxu0 0.0
    %337 = vmatpush1.msra.mxu0 0.0
    %338 = vmatprep.subr.mxu0 0.0
    %339 = vmatpush1.msra.mxu0 0.0
    %340 = vmatprep.subr.mxu0 0.0
    %341 = vmatpush1.msra.mxu0 0.0
    %342 = vmatprep.subr.mxu0 0.0
    %343 = vmatpush1.msra.mxu0 0.0
    %344 = vmatprep.subr.mxu0 0.0
    %345 = vmatpush1.msra.mxu0 0.0
    %346 = vmatprep.subr.mxu0 0.0
    %347 = vmatpush1.msra.mxu0 0.0
    %348 = vmatprep.subr.mxu0 0.0
    %349 = vmatpush1.msra.mxu0 0.0
    %350 = vmatprep.subr.mxu0 0.0
    %351 = vmatpush1.msra.mxu0 0.0
    %352 = vmatprep.subr.mxu0 0.0
    %353 = vmatpush1.msra.mxu0 0.0
    %354 = vmatprep.subr.mxu0 0.0
    %355 = vmatpush1.msra.mxu0 0.0
    %356 = vmatprep.subr.mxu0 0.0
    %357 = vmatpush1.msra.mxu0 0.0
    %358 = vmatprep.subr.mxu0 0.0
    %359 = vmatpush1.msra.mxu0 0.0
    %360 = vmatprep.subr.mxu0 0.0
    %361 = vmatpush1.msra.mxu0 0.0
    %362 = vmatprep.subr.mxu0 0.0
    %363 = vmatpush1.msra.mxu0 0.0
    %364 = vmatprep.mubr.f32.mxu0 0.0
    %v365 = vand.u32 %v71, 4294901760
    %v366 = vsub.f32 %v71, %v365
    %v367 = vand.u32 %v366, 4294901760
    %368 = vmatmul.mubr.f32.gmra.mrb[0].mxu0 %v367
    %v369 = vpop.f32.mrb[0].mxu0
    %v370 = vadd.f32 %v296, %v369
    %v371 = vpop.f32.mrb[0].mxu0
    %372 = vdwg.mxu0
    %373 = vmatprep.subr.mxu0 0.0
    %v374 = vand.u32 %v65, 4294901760
    %v375 = vsub.f32 %v65, %v374
    %v376 = vand.u32 %v375, 4294901760
    %377 = vmatpush1.msra.mxu0 %v376
    %378 = vmatprep.subr.mxu0 0.0
    %379 = vmatpush1.msra.mxu0 0.0
    %380 = vmatprep.subr.mxu0 0.0
    %381 = vmatpush1.msra.mxu0 0.0
    %382 = vmatprep.subr.mxu0 0.0
    %383 = vmatpush1.msra.mxu0 0.0
    %384 = vmatprep.subr.mxu0 0.0
    %385 = vmatpush1.msra.mxu0 0.0
    %386 = vmatprep.subr.mxu0 0.0
    %387 = vmatpush1.msra.mxu0 0.0
    %388 = vmatprep.subr.mxu0 0.0
    %389 = vmatpush1.msra.mxu0 0.0
    %390 = vmatprep.subr.mxu0 0.0
    %391 = vmatpush1.msra.mxu0 0.0
    %392 = vmatprep.subr.mxu0 0.0
    %393 = vmatpush1.msra.mxu0 0.0
    %394 = vmatprep.subr.mxu0 0.0
    %395 = vmatpush1.msra.mxu0 0.0
    %396 = vmatprep.subr.mxu0 0.0
    %397 = vmatpush1.msra.mxu0 0.0
    %398 = vmatprep.subr.mxu0 0.0
    %399 = vmatpush1.msra.mxu0 0.0
    %400 = vmatprep.subr.mxu0 0.0
    %401 = vmatpush1.msra.mxu0 0.0
    %402 = vmatprep.subr.mxu0 0.0
    %403 = vmatpush1.msra.mxu0 0.0
    %404 = vmatprep.subr.mxu0 0.0
    %405 = vmatpush1.msra.mxu0 0.0
    %406 = vmatprep.subr.mxu0 0.0
    %407 = vmatpush1.msra.mxu0 0.0
    %408 = vmatprep.subr.mxu0 0.0
    %409 = vmatpush1.msra.mxu0 0.0
    %410 = vmatprep.subr.mxu0 0.0
    %411 = vmatpush1.msra.mxu0 0.0
    %412 = vmatprep.subr.mxu0 0.0
    %413 = vmatpush1.msra.mxu0 0.0
    %414 = vmatprep.subr.mxu0 0.0
    %415 = vmatpush1.msra.mxu0 0.0
    %416 = vmatprep.subr.mxu0 0.0
    %417 = vmatpush1.msra.mxu0 0.0
    %418 = vmatprep.subr.mxu0 0.0
    %419 = vmatpush1.msra.mxu0 0.0
    %420 = vmatprep.subr.mxu0 0.0
    %421 = vmatpush1.msra.mxu0 0.0
    %422 = vmatprep.subr.mxu0 0.0
    %423 = vmatpush1.msra.mxu0 0.0
    %424 = vmatprep.subr.mxu0 0.0
    %425 = vmatpush1.msra.mxu0 0.0
    %426 = vmatprep.subr.mxu0 0.0
    %427 = vmatpush1.msra.mxu0 0.0
    %428 = vmatprep.subr.mxu0 0.0
    %429 = vmatpush1.msra.mxu0 0.0
    %430 = vmatprep.subr.mxu0 0.0
    %431 = vmatpush1.msra.mxu0 0.0
    %432 = vmatprep.subr.mxu0 0.0
    %433 = vmatpush1.msra.mxu0 0.0
    %434 = vmatprep.subr.mxu0 0.0
    %435 = vmatpush1.msra.mxu0 0.0
    %436 = vmatprep.subr.mxu0 0.0
    %437 = vmatpush1.msra.mxu0 0.0
    %438 = vmatprep.subr.mxu0 0.0
    %439 = vmatpush1.msra.mxu0 0.0
    %440 = vmatprep.mubr.f32.mxu0 0.0
    %v441 = vand.u32 %v71, 4294901760
    %442 = vmatmul.mubr.f32.gmra.mrb[0].mxu0 %v441
    %v443 = vpop.f32.mrb[0].mxu0
    %v444 = vadd.f32 %v370, %v443
    %v445 = vpop.f32.mrb[0].mxu0
    %446 = vdwg.mxu0
    %447 = vmatprep.subr.mxu0 0.0
    %v448 = vand.u32 %v65, 4294901760
    %449 = vmatpush1.msra.mxu0 %v448
    %450 = vmatprep.subr.mxu0 0.0
    %451 = vmatpush1.msra.mxu0 0.0
    %452 = vmatprep.subr.mxu0 0.0
    %453 = vmatpush1.msra.mxu0 0.0
    %454 = vmatprep.subr.mxu0 0.0
    %455 = vmatpush1.msra.mxu0 0.0
    %456 = vmatprep.subr.mxu0 0.0
    %457 = vmatpush1.msra.mxu0 0.0
    %458 = vmatprep.subr.mxu0 0.0
    %459 = vmatpush1.msra.mxu0 0.0
    %460 = vmatprep.subr.mxu0 0.0
    %461 = vmatpush1.msra.mxu0 0.0
    %462 = vmatprep.subr.mxu0 0.0
    %463 = vmatpush1.msra.mxu0 0.0
    %464 = vmatprep.subr.mxu0 0.0
    %465 = vmatpush1.msra.mxu0 0.0
    %466 = vmatprep.subr.mxu0 0.0
    %467 = vmatpush1.msra.mxu0 0.0
    %468 = vmatprep.subr.mxu0 0.0
    %469 = vmatpush1.msra.mxu0 0.0
    %470 = vmatprep.subr.mxu0 0.0
    %471 = vmatpush1.msra.mxu0 0.0
    %472 = vmatprep.subr.mxu0 0.0
    %473 = vmatpush1.msra.mxu0 0.0
    %474 = vmatprep.subr.mxu0 0.0
    %475 = vmatpush1.msra.mxu0 0.0
    %476 = vmatprep.subr.mxu0 0.0
    %477 = vmatpush1.msra.mxu0 0.0
    %478 = vmatprep.subr.mxu0 0.0
    %479 = vmatpush1.msra.mxu0 0.0
    %480 = vmatprep.subr.mxu0 0.0
    %481 = vmatpush1.msra.mxu0 0.0
    %482 = vmatprep.subr.mxu0 0.0
    %483 = vmatpush1.msra.mxu0 0.0
    %484 = vmatprep.subr.mxu0 0.0
    %485 = vmatpush1.msra.mxu0 0.0
    %486 = vmatprep.subr.mxu0 0.0
    %487 = vmatpush1.msra.mxu0 0.0
    %488 = vmatprep.subr.mxu0 0.0
    %489 = vmatpush1.msra.mxu0 0.0
    %490 = vmatprep.subr.mxu0 0.0
    %491 = vmatpush1.msra.mxu0 0.0
    %492 = vmatprep.subr.mxu0 0.0
    %493 = vmatpush1.msra.mxu0 0.0
    %494 = vmatprep.subr.mxu0 0.0
    %495 = vmatpush1.msra.mxu0 0.0
    %496 = vmatprep.subr.mxu0 0.0
    %497 = vmatpush1.msra.mxu0 0.0
    %498 = vmatprep.subr.mxu0 0.0
    %499 = vmatpush1.msra.mxu0 0.0
    %500 = vmatprep.subr.mxu0 0.0
    %501 = vmatpush1.msra.mxu0 0.0
    %502 = vmatprep.subr.mxu0 0.0
    %503 = vmatpush1.msra.mxu0 0.0
    %504 = vmatprep.subr.mxu0 0.0
    %505 = vmatpush1.msra.mxu0 0.0
    %506 = vmatprep.subr.mxu0 0.0
    %507 = vmatpush1.msra.mxu0 0.0
    %508 = vmatprep.subr.mxu0 0.0
    %509 = vmatpush1.msra.mxu0 0.0
    %510 = vmatprep.subr.mxu0 0.0
    %511 = vmatpush1.msra.mxu0 0.0
    %512 = vmatprep.mubr.f32.mxu0 0.0
    %v513 = vand.u32 %v71, 4294901760
    %514 = vmatmul.mubr.f32.gmra.mrb[0].mxu0 %v513
    %v515 = vpop.f32.mrb[0].mxu0
    %v516 = vadd.f32 %v444, %v515
    %v517 = vpop.f32.mrb[0].mxu0
    %518 = vdwg.mxu0
    %v520 = vsel %vm69, %v68, 0
    %522 = vmatprep.subr.mxu0 0.0
    %v523 = vand.u32 %v66, 4294901760
    %524 = vmatpush1.msra.mxu0 %v523
    %525 = vmatprep.subr.mxu0 0.0
    %526 = vmatpush1.msra.mxu0 0.0
    %527 = vmatprep.subr.mxu0 0.0
    %528 = vmatpush1.msra.mxu0 0.0
    %529 = vmatprep.subr.mxu0 0.0
    %530 = vmatpush1.msra.mxu0 0.0
    %531 = vmatprep.subr.mxu0 0.0
    %532 = vmatpush1.msra.mxu0 0.0
    %533 = vmatprep.subr.mxu0 0.0
    %534 = vmatpush1.msra.mxu0 0.0
    %535 = vmatprep.subr.mxu0 0.0
    %536 = vmatpush1.msra.mxu0 0.0
    %537 = vmatprep.subr.mxu0 0.0
    %538 = vmatpush1.msra.mxu0 0.0
    %539 = vmatprep.subr.mxu0 0.0
    %540 = vmatpush1.msra.mxu0 0.0
    %541 = vmatprep.subr.mxu0 0.0
    %542 = vmatpush1.msra.mxu0 0.0
    %543 = vmatprep.subr.mxu0 0.0
    %544 = vmatpush1.msra.mxu0 0.0
    %545 = vmatprep.subr.mxu0 0.0
    %546 = vmatpush1.msra.mxu0 0.0
    %547 = vmatprep.subr.mxu0 0.0
    %548 = vmatpush1.msra.mxu0 0.0
    %549 = vmatprep.subr.mxu0 0.0
    %550 = vmatpush1.msra.mxu0 0.0
    %551 = vmatprep.subr.mxu0 0.0
    %552 = vmatpush1.msra.mxu0 0.0
    %553 = vmatprep.subr.mxu0 0.0
    %554 = vmatpush1.msra.mxu0 0.0
    %555 = vmatprep.subr.mxu0 0.0
    %556 = vmatpush1.msra.mxu0 0.0
    %557 = vmatprep.subr.mxu0 0.0
    %558 = vmatpush1.msra.mxu0 0.0
    %559 = vmatprep.subr.mxu0 0.0
    %560 = vmatpush1.msra.mxu0 0.0
    %561 = vmatprep.subr.mxu0 0.0
    %562 = vmatpush1.msra.mxu0 0.0
    %563 = vmatprep.subr.mxu0 0.0
    %564 = vmatpush1.msra.mxu0 0.0
    %565 = vmatprep.subr.mxu0 0.0
    %566 = vmatpush1.msra.mxu0 0.0
    %567 = vmatprep.subr.mxu0 0.0
    %568 = vmatpush1.msra.mxu0 0.0
    %569 = vmatprep.subr.mxu0 0.0
    %570 = vmatpush1.msra.mxu0 0.0
    %571 = vmatprep.subr.mxu0 0.0
    %572 = vmatpush1.msra.mxu0 0.0
    %573 = vmatprep.subr.mxu0 0.0
    %574 = vmatpush1.msra.mxu0 0.0
    %575 = vmatprep.subr.mxu0 0.0
    %576 = vmatpush1.msra.mxu0 0.0
    %577 = vmatprep.subr.mxu0 0.0
    %578 = vmatpush1.msra.mxu0 0.0
    %579 = vmatprep.subr.mxu0 0.0
    %580 = vmatpush1.msra.mxu0 0.0
    %581 = vmatprep.subr.mxu0 0.0
    %582 = vmatpush1.msra.mxu0 0.0
    %583 = vmatprep.subr.mxu0 0.0
    %584 = vmatpush1.msra.mxu0 0.0
    %585 = vmatprep.subr.mxu0 0.0
    %586 = vmatpush1.msra.mxu0 0.0
    %587 = vmatprep.mubr.f32.mxu0 0.0
    %v588 = vand.u32 %v520, 4294901760
    %v589 = vsub.f32 %v520, %v588
    %v590 = vand.u32 %v589, 4294901760
    %v591 = vsub.f32 %v589, %v590
    %v592 = vand.u32 %v591, 4294901760
    %593 = vmatmul.mubr.f32.gmra.mrb[0].mxu0 %v592
    %v594 = vpop.f32.mrb[0].mxu0
    %v595 = vadd.f32 0.0, %v594
    %v596 = vpop.f32.mrb[0].mxu0
    %597 = vdwg.mxu0
    %598 = vmatprep.subr.mxu0 0.0
    %v599 = vand.u32 %v66, 4294901760
    %v600 = vsub.f32 %v66, %v599
    %v601 = vand.u32 %v600, 4294901760
    %v602 = vsub.f32 %v600, %v601
    %v603 = vand.u32 %v602, 4294901760
    %604 = vmatpush1.msra.mxu0 %v603
    %605 = vmatprep.subr.mxu0 0.0
    %606 = vmatpush1.msra.mxu0 0.0
    %607 = vmatprep.subr.mxu0 0.0
    %608 = vmatpush1.msra.mxu0 0.0
    %609 = vmatprep.subr.mxu0 0.0
    %610 = vmatpush1.msra.mxu0 0.0
    %611 = vmatprep.subr.mxu0 0.0
    %612 = vmatpush1.msra.mxu0 0.0
    %613 = vmatprep.subr.mxu0 0.0
    %614 = vmatpush1.msra.mxu0 0.0
    %615 = vmatprep.subr.mxu0 0.0
    %616 = vmatpush1.msra.mxu0 0.0
    %617 = vmatprep.subr.mxu0 0.0
    %618 = vmatpush1.msra.mxu0 0.0
    %619 = vmatprep.subr.mxu0 0.0
    %620 = vmatpush1.msra.mxu0 0.0
    %621 = vmatprep.subr.mxu0 0.0
    %622 = vmatpush1.msra.mxu0 0.0
    %623 = vmatprep.subr.mxu0 0.0
    %624 = vmatpush1.msra.mxu0 0.0
    %625 = vmatprep.subr.mxu0 0.0
    %626 = vmatpush1.msra.mxu0 0.0
    %627 = vmatprep.subr.mxu0 0.0
    %628 = vmatpush1.msra.mxu0 0.0
    %629 = vmatprep.subr.mxu0 0.0
    %630 = vmatpush1.msra.mxu0 0.0
    %631 = vmatprep.subr.mxu0 0.0
    %632 = vmatpush1.msra.mxu0 0.0
    %633 = vmatprep.subr.mxu0 0.0
    %634 = vmatpush1.msra.mxu0 0.0
    %635 = vmatprep.subr.mxu0 0.0
    %636 = vmatpush1.msra.mxu0 0.0
    %637 = vmatprep.subr.mxu0 0.0
    %638 = vmatpush1.msra.mxu0 0.0
    %639 = vmatprep.subr.mxu0 0.0
    %640 = vmatpush1.msra.mxu0 0.0
    %641 = vmatprep.subr.mxu0 0.0
    %642 = vmatpush1.msra.mxu0 0.0
    %643 = vmatprep.subr.mxu0 0.0
    %644 = vmatpush1.msra.mxu0 0.0
    %645 = vmatprep.subr.mxu0 0.0
    %646 = vmatpush1.msra.mxu0 0.0
    %647 = vmatprep.subr.mxu0 0.0
    %648 = vmatpush1.msra.mxu0 0.0
    %649 = vmatprep.subr.mxu0 0.0
    %650 = vmatpush1.msra.mxu0 0.0
    %651 = vmatprep.subr.mxu0 0.0
    %652 = vmatpush1.msra.mxu0 0.0
    %653 = vmatprep.subr.mxu0 0.0
    %654 = vmatpush1.msra.mxu0 0.0
    %655 = vmatprep.subr.mxu0 0.0
    %656 = vmatpush1.msra.mxu0 0.0
    %657 = vmatprep.subr.mxu0 0.0
    %658 = vmatpush1.msra.mxu0 0.0
    %659 = vmatprep.subr.mxu0 0.0
    %660 = vmatpush1.msra.mxu0 0.0
    %661 = vmatprep.subr.mxu0 0.0
    %662 = vmatpush1.msra.mxu0 0.0
    %663 = vmatprep.subr.mxu0 0.0
    %664 = vmatpush1.msra.mxu0 0.0
    %665 = vmatprep.subr.mxu0 0.0
    %666 = vmatpush1.msra.mxu0 0.0
    %667 = vmatprep.mubr.f32.mxu0 0.0
    %v668 = vand.u32 %v520, 4294901760
    %669 = vmatmul.mubr.f32.gmra.mrb[0].mxu0 %v668
    %v670 = vpop.f32.mrb[0].mxu0
    %v671 = vadd.f32 %v595, %v670
    %v672 = vpop.f32.mrb[0].mxu0
    %673 = vdwg.mxu0
    %674 = vmatprep.subr.mxu0 0.0
    %v675 = vand.u32 %v66, 4294901760
    %v676 = vsub.f32 %v66, %v675
    %677 = vmatpush1.msra.mxu0 %v676
    %678 = vmatprep.subr.mxu0 0.0
    %679 = vmatpush1.msra.mxu0 0.0
    %680 = vmatprep.subr.mxu0 0.0
    %681 = vmatpush1.msra.mxu0 0.0
    %682 = vmatprep.subr.mxu0 0.0
    %683 = vmatpush1.msra.mxu0 0.0
    %684 = vmatprep.subr.mxu0 0.0
    %685 = vmatpush1.msra.mxu0 0.0
    %686 = vmatprep.subr.mxu0 0.0
    %687 = vmatpush1.msra.mxu0 0.0
    %688 = vmatprep.subr.mxu0 0.0
    %689 = vmatpush1.msra.mxu0 0.0
    %690 = vmatprep.subr.mxu0 0.0
    %691 = vmatpush1.msra.mxu0 0.0
    %692 = vmatprep.subr.mxu0 0.0
    %693 = vmatpush1.msra.mxu0 0.0
    %694 = vmatprep.subr.mxu0 0.0
    %695 = vmatpush1.msra.mxu0 0.0
    %696 = vmatprep.subr.mxu0 0.0
    %697 = vmatpush1.msra.mxu0 0.0
    %698 = vmatprep.subr.mxu0 0.0
    %699 = vmatpush1.msra.mxu0 0.0
    %700 = vmatprep.subr.mxu0 0.0
    %701 = vmatpush1.msra.mxu0 0.0
    %702 = vmatprep.subr.mxu0 0.0
    %703 = vmatpush1.msra.mxu0 0.0
    %704 = vmatprep.subr.mxu0 0.0
    %705 = vmatpush1.msra.mxu0 0.0
    %706 = vmatprep.subr.mxu0 0.0
    %707 = vmatpush1.msra.mxu0 0.0
    %708 = vmatprep.subr.mxu0 0.0
    %709 = vmatpush1.msra.mxu0 0.0
    %710 = vmatprep.subr.mxu0 0.0
    %711 = vmatpush1.msra.mxu0 0.0
    %712 = vmatprep.subr.mxu0 0.0
    %713 = vmatpush1.msra.mxu0 0.0
    %714 = vmatprep.subr.mxu0 0.0
    %715 = vmatpush1.msra.mxu0 0.0
    %716 = vmatprep.subr.mxu0 0.0
    %717 = vmatpush1.msra.mxu0 0.0
    %718 = vmatprep.subr.mxu0 0.0
    %719 = vmatpush1.msra.mxu0 0.0
    %720 = vmatprep.subr.mxu0 0.0
    %721 = vmatpush1.msra.mxu0 0.0
    %722 = vmatprep.subr.mxu0 0.0
    %723 = vmatpush1.msra.mxu0 0.0
    %724 = vmatprep.subr.mxu0 0.0
    %725 = vmatpush1.msra.mxu0 0.0
    %726 = vmatprep.subr.mxu0 0.0
    %727 = vmatpush1.msra.mxu0 0.0
    %728 = vmatprep.subr.mxu0 0.0
    %729 = vmatpush1.msra.mxu0 0.0
    %730 = vmatprep.subr.mxu0 0.0
    %731 = vmatpush1.msra.mxu0 0.0
    %732 = vmatprep.subr.mxu0 0.0
    %733 = vmatpush1.msra.mxu0 0.0
    %734 = vmatprep.subr.mxu0 0.0
    %735 = vmatpush1.msra.mxu0 0.0
    %736 = vmatprep.subr.mxu0 0.0
    %737 = vmatpush1.msra.mxu0 0.0
    %738 = vmatprep.subr.mxu0 0.0
    %739 = vmatpush1.msra.mxu0 0.0
    %740 = vmatprep.mubr.f32.mxu0 0.0
    %v741 = vand.u32 %v520, 4294901760
    %v742 = vsub.f32 %v520, %v741
    %743 = vmatmul.mubr.f32.gmra.mrb[0].mxu0 %v742
    %v744 = vpop.f32.mrb[0].mxu0
    %v745 = vadd.f32 %v671, %v744
    %v746 = vpop.f32.mrb[0].mxu0
    %747 = vdwg.mxu0
    %748 = vmatprep.subr.mxu0 0.0
    %v749 = vand.u32 %v66, 4294901760
    %750 = vmatpush1.msra.mxu0 %v749
    %751 = vmatprep.subr.mxu0 0.0
    %752 = vmatpush1.msra.mxu0 0.0
    %753 = vmatprep.subr.mxu0 0.0
    %754 = vmatpush1.msra.mxu0 0.0
    %755 = vmatprep.subr.mxu0 0.0
    %756 = vmatpush1.msra.mxu0 0.0
    %757 = vmatprep.subr.mxu0 0.0
    %758 = vmatpush1.msra.mxu0 0.0
    %759 = vmatprep.subr.mxu0 0.0
    %760 = vmatpush1.msra.mxu0 0.0
    %761 = vmatprep.subr.mxu0 0.0
    %762 = vmatpush1.msra.mxu0 0.0
    %763 = vmatprep.subr.mxu0 0.0
    %764 = vmatpush1.msra.mxu0 0.0
    %765 = vmatprep.subr.mxu0 0.0
    %766 = vmatpush1.msra.mxu0 0.0
    %767 = vmatprep.subr.mxu0 0.0
    %768 = vmatpush1.msra.mxu0 0.0
    %769 = vmatprep.subr.mxu0 0.0
    %770 = vmatpush1.msra.mxu0 0.0
    %771 = vmatprep.subr.mxu0 0.0
    %772 = vmatpush1.msra.mxu0 0.0
    %773 = vmatprep.subr.mxu0 0.0
    %774 = vmatpush1.msra.mxu0 0.0
    %775 = vmatprep.subr.mxu0 0.0
    %776 = vmatpush1.msra.mxu0 0.0
    %777 = vmatprep.subr.mxu0 0.0
    %778 = vmatpush1.msra.mxu0 0.0
    %779 = vmatprep.subr.mxu0 0.0
    %780 = vmatpush1.msra.mxu0 0.0
    %781 = vmatprep.subr.mxu0 0.0
    %782 = vmatpush1.msra.mxu0 0.0
    %783 = vmatprep.subr.mxu0 0.0
    %784 = vmatpush1.msra.mxu0 0.0
    %785 = vmatprep.subr.mxu0 0.0
    %786 = vmatpush1.msra.mxu0 0.0
    %787 = vmatprep.subr.mxu0 0.0
    %788 = vmatpush1.msra.mxu0 0.0
    %789 = vmatprep.subr.mxu0 0.0
    %790 = vmatpush1.msra.mxu0 0.0
    %791 = vmatprep.subr.mxu0 0.0
    %792 = vmatpush1.msra.mxu0 0.0
    %793 = vmatprep.subr.mxu0 0.0
    %794 = vmatpush1.msra.mxu0 0.0
    %795 = vmatprep.subr.mxu0 0.0
    %796 = vmatpush1.msra.mxu0 0.0
    %797 = vmatprep.subr.mxu0 0.0
    %798 = vmatpush1.msra.mxu0 0.0
    %799 = vmatprep.subr.mxu0 0.0
    %800 = vmatpush1.msra.mxu0 0.0
    %801 = vmatprep.subr.mxu0 0.0
    %802 = vmatpush1.msra.mxu0 0.0
    %803 = vmatprep.subr.mxu0 0.0
    %804 = vmatpush1.msra.mxu0 0.0
    %805 = vmatprep.subr.mxu0 0.0
    %806 = vmatpush1.msra.mxu0 0.0
    %807 = vmatprep.subr.mxu0 0.0
    %808 = vmatpush1.msra.mxu0 0.0
    %809 = vmatprep.subr.mxu0 0.0
    %810 = vmatpush1.msra.mxu0 0.0
    %811 = vmatprep.subr.mxu0 0.0
    %812 = vmatpush1.msra.mxu0 0.0
    %813 = vmatprep.mubr.f32.mxu0 0.0
    %v814 = vand.u32 %v520, 4294901760
    %v815 = vsub.f32 %v520, %v814
    %v816 = vand.u32 %v815, 4294901760
    %817 = vmatmul.mubr.f32.gmra.mrb[0].mxu0 %v816
    %v818 = vpop.f32.mrb[0].mxu0
    %v819 = vadd.f32 %v745, %v818
    %v820 = vpop.f32.mrb[0].mxu0
    %821 = vdwg.mxu0
    %822 = vmatprep.subr.mxu0 0.0
    %v823 = vand.u32 %v66, 4294901760
    %v824 = vsub.f32 %v66, %v823
    %v825 = vand.u32 %v824, 4294901760
    %826 = vmatpush1.msra.mxu0 %v825
    %827 = vmatprep.subr.mxu0 0.0
    %828 = vmatpush1.msra.mxu0 0.0
    %829 = vmatprep.subr.mxu0 0.0
    %830 = vmatpush1.msra.mxu0 0.0
    %831 = vmatprep.subr.mxu0 0.0
    %832 = vmatpush1.msra.mxu0 0.0
    %833 = vmatprep.subr.mxu0 0.0
    %834 = vmatpush1.msra.mxu0 0.0
    %835 = vmatprep.subr.mxu0 0.0
    %836 = vmatpush1.msra.mxu0 0.0
    %837 = vmatprep.subr.mxu0 0.0
    %838 = vmatpush1.msra.mxu0 0.0
    %839 = vmatprep.subr.mxu0 0.0
    %840 = vmatpush1.msra.mxu0 0.0
    %841 = vmatprep.subr.mxu0 0.0
    %842 = vmatpush1.msra.mxu0 0.0
    %843 = vmatprep.subr.mxu0 0.0
    %844 = vmatpush1.msra.mxu0 0.0
    %845 = vmatprep.subr.mxu0 0.0
    %846 = vmatpush1.msra.mxu0 0.0
    %847 = vmatprep.subr.mxu0 0.0
    %848 = vmatpush1.msra.mxu0 0.0
    %849 = vmatprep.subr.mxu0 0.0
    %850 = vmatpush1.msra.mxu0 0.0
    %851 = vmatprep.subr.mxu0 0.0
    %852 = vmatpush1.msra.mxu0 0.0
    %853 = vmatprep.subr.mxu0 0.0
    %854 = vmatpush1.msra.mxu0 0.0
    %855 = vmatprep.subr.mxu0 0.0
    %856 = vmatpush1.msra.mxu0 0.0
    %857 = vmatprep.subr.mxu0 0.0
    %858 = vmatpush1.msra.mxu0 0.0
    %859 = vmatprep.subr.mxu0 0.0
    %860 = vmatpush1.msra.mxu0 0.0
    %861 = vmatprep.subr.mxu0 0.0
    %862 = vmatpush1.msra.mxu0 0.0
    %863 = vmatprep.subr.mxu0 0.0
    %864 = vmatpush1.msra.mxu0 0.0
    %865 = vmatprep.subr.mxu0 0.0
    %866 = vmatpush1.msra.mxu0 0.0
    %867 = vmatprep.subr.mxu0 0.0
    %868 = vmatpush1.msra.mxu0 0.0
    %869 = vmatprep.subr.mxu0 0.0
    %870 = vmatpush1.msra.mxu0 0.0
    %871 = vmatprep.subr.mxu0 0.0
    %872 = vmatpush1.msra.mxu0 0.0
    %873 = vmatprep.subr.mxu0 0.0
    %874 = vmatpush1.msra.mxu0 0.0
    %875 = vmatprep.subr.mxu0 0.0
    %876 = vmatpush1.msra.mxu0 0.0
    %877 = vmatprep.subr.mxu0 0.0
    %878 = vmatpush1.msra.mxu0 0.0
    %879 = vmatprep.subr.mxu0 0.0
    %880 = vmatpush1.msra.mxu0 0.0
    %881 = vmatprep.subr.mxu0 0.0
    %882 = vmatpush1.msra.mxu0 0.0
    %883 = vmatprep.subr.mxu0 0.0
    %884 = vmatpush1.msra.mxu0 0.0
    %885 = vmatprep.subr.mxu0 0.0
    %886 = vmatpush1.msra.mxu0 0.0
    %887 = vmatprep.subr.mxu0 0.0
    %888 = vmatpush1.msra.mxu0 0.0
    %889 = vmatprep.mubr.f32.mxu0 0.0
    %v890 = vand.u32 %v520, 4294901760
    %891 = vmatmul.mubr.f32.gmra.mrb[0].mxu0 %v890
    %v892 = vpop.f32.mrb[0].mxu0
    %v893 = vadd.f32 %v819, %v892
    %v894 = vpop.f32.mrb[0].mxu0
    %895 = vdwg.mxu0
    %896 = vmatprep.subr.mxu0 0.0
    %v897 = vand.u32 %v66, 4294901760
    %898 = vmatpush1.msra.mxu0 %v897
    %899 = vmatprep.subr.mxu0 0.0
    %900 = vmatpush1.msra.mxu0 0.0
    %901 = vmatprep.subr.mxu0 0.0
    %902 = vmatpush1.msra.mxu0 0.0
    %903 = vmatprep.subr.mxu0 0.0
    %904 = vmatpush1.msra.mxu0 0.0
    %905 = vmatprep.subr.mxu0 0.0
    %906 = vmatpush1.msra.mxu0 0.0
    %907 = vmatprep.subr.mxu0 0.0
    %908 = vmatpush1.msra.mxu0 0.0
    %909 = vmatprep.subr.mxu0 0.0
    %910 = vmatpush1.msra.mxu0 0.0
    %911 = vmatprep.subr.mxu0 0.0
    %912 = vmatpush1.msra.mxu0 0.0
    %913 = vmatprep.subr.mxu0 0.0
    %914 = vmatpush1.msra.mxu0 0.0
    %915 = vmatprep.subr.mxu0 0.0
    %916 = vmatpush1.msra.mxu0 0.0
    %917 = vmatprep.subr.mxu0 0.0
    %918 = vmatpush1.msra.mxu0 0.0
    %919 = vmatprep.subr.mxu0 0.0
    %920 = vmatpush1.msra.mxu0 0.0
    %921 = vmatprep.subr.mxu0 0.0
    %922 = vmatpush1.msra.mxu0 0.0
    %923 = vmatprep.subr.mxu0 0.0
    %924 = vmatpush1.msra.mxu0 0.0
    %925 = vmatprep.subr.mxu0 0.0
    %926 = vmatpush1.msra.mxu0 0.0
    %927 = vmatprep.subr.mxu0 0.0
    %928 = vmatpush1.msra.mxu0 0.0
    %929 = vmatprep.subr.mxu0 0.0
    %930 = vmatpush1.msra.mxu0 0.0
    %931 = vmatprep.subr.mxu0 0.0
    %932 = vmatpush1.msra.mxu0 0.0
    %933 = vmatprep.subr.mxu0 0.0
    %934 = vmatpush1.msra.mxu0 0.0
    %935 = vmatprep.subr.mxu0 0.0
    %936 = vmatpush1.msra.mxu0 0.0
    %937 = vmatprep.subr.mxu0 0.0
    %938 = vmatpush1.msra.mxu0 0.0
    %939 = vmatprep.subr.mxu0 0.0
    %940 = vmatpush1.msra.mxu0 0.0
    %941 = vmatprep.subr.mxu0 0.0
    %942 = vmatpush1.msra.mxu0 0.0
    %943 = vmatprep.subr.mxu0 0.0
    %944 = vmatpush1.msra.mxu0 0.0
    %945 = vmatprep.subr.mxu0 0.0
    %946 = vmatpush1.msra.mxu0 0.0
    %947 = vmatprep.subr.mxu0 0.0
    %948 = vmatpush1.msra.mxu0 0.0
    %949 = vmatprep.subr.mxu0 0.0
    %950 = vmatpush1.msra.mxu0 0.0
    %951 = vmatprep.subr.mxu0 0.0
    %952 = vmatpush1.msra.mxu0 0.0
    %953 = vmatprep.subr.mxu0 0.0
    %954 = vmatpush1.msra.mxu0 0.0
    %955 = vmatprep.subr.mxu0 0.0
    %956 = vmatpush1.msra.mxu0 0.0
    %957 = vmatprep.subr.mxu0 0.0
    %958 = vmatpush1.msra.mxu0 0.0
    %959 = vmatprep.subr.mxu0 0.0
    %960 = vmatpush1.msra.mxu0 0.0
    %961 = vmatprep.mubr.f32.mxu0 0.0
    %v962 = vand.u32 %v520, 4294901760
    %963 = vmatmul.mubr.f32.gmra.mrb[0].mxu0 %v962
    %v964 = vpop.f32.mrb[0].mxu0
    %v965 = vadd.f32 %v893, %v964
    %v966 = vpop.f32.mrb[0].mxu0
    %967 = vdwg.mxu0
    %v968 = vld [vmem:[#allocation2] sm:$0x1]
    %v969 = vld [vmem:[#allocation2 + $0x1] sm:$0x1]
    %v970 = vadd.f32 %v968, %v516
    %v971 = vadd.f32 %v969, %v965
    %vm972 = vcmask 253952
    %973 = vst.msk [vmem:[#allocation2] sm:$0x1] %vm972, %v970
    %974 = vst.msk [vmem:[#allocation2 + $0x1] sm:$0x1] %vm972, %v971
    // Predicated region
    $region18: #{tpu_custom_call.1} parent=1 // pred_check
      %p975 = pneg %p58
    $region19: #{tpu_custom_call.1} parent=1 // pred_check_branch
      %977 = sbr.rel (%p975) target = $region21
    $region20: #{tpu_custom_call.1} parent=1 // pred_region
      %v978 = vld [vmem:[#allocation2] sm:$0x1]
      %v979 = vld [vmem:[#allocation2 + $0x1] sm:$0x1]
      %980 = vst.msk [vmem:[#allocation6] sm:$0x1] %vm972, %v978
      %981 = vst.msk [vmem:[#allocation6 + $0x1] sm:$0x1] %vm972, %v979
    $region21: #{tpu_custom_call.1} parent=1 // pred_fallthru
      _
    // Predicated region
    $region22: #{tpu_custom_call.1} parent=1 // pred_check
      _
    $region23: #{tpu_custom_call.1} parent=1 // pred_check_branch
      %983 = sbr.rel (0) target = $region25
    $region24: #{tpu_custom_call.1} parent=1 // pred_region
      %s985 = ssub.s32 32, 32
      %986 = vsyncadd [#allocation5], %s985
      %s987 = sshll.u32 [#allocation6], 4
      %s988 = int_to_ptr.vmem [resolvable:$true] %s987
      %993 = dma.vmem_to_hbm [thread:$0]  %s988, 32, %s2, [#allocation5], 16, 16, 1
    $region25: #{tpu_custom_call.1} parent=1 // pred_fallthru
      _
    // Predicated region
    $region26: #{tpu_custom_call.1} parent=1 // pred_check
      _
    $region27: #{tpu_custom_call.1} parent=1 // pred_check_branch
      %995 = sbr.rel (0) target = $region29
    $region28: #{tpu_custom_call.1} parent=1 // pred_region
      %996 = dma.done [#allocation5], 32
    $region29: #{tpu_custom_call.1} parent=1 // pred_fallthru
      _
    %997 = vsyncpa [#allocation4], 1
    %998 = vsyncpa [#allocation5], 1

</llo_original>
